<compile_context>
chip_gen: v6e
topology: v6e:2x2x1
jax: 0.10.0
libtpu: 0.0.40
codegen_flags: <defaults>
</compile_context>

<pallas_src>
import math

import jax
import jax.numpy as jnp
import numpy as np
from jax import lax  # noqa: F401  (kept for parity with other kernels)
from jax.experimental import pallas as pl
from jax.experimental.pallas import tpu as pltpu

_INV_SQRT2 = 1.0 / math.sqrt(2.0)


# ----------------------------- kernel helpers ------------------------------
def _erf_poly(x):
    # TODO(synk): lax.erf has no guaranteed Mosaic lowering; use the
    # Abramowitz-Stegun 7.1.26 polynomial (|abs err| < 1.5e-7) so
    # F.gelu(approximate='none') semantics are preserved to float precision.
    a1, a2, a3, a4, a5 = (0.254829592, -0.284496736, 1.421413741,
                          -1.453152027, 1.061405429)
    p = 0.3275911
    sgn = jnp.where(x >= 0.0, 1.0, -1.0)
    ax = jnp.abs(x)
    # EUP reciprocal (approx) instead of a VALU divide; ~2^-14 rel error.
    t = pl.reciprocal(1.0 + p * ax, approx=True)
    poly = ((((a5 * t + a4) * t + a3) * t + a2) * t + a1) * t
    return sgn * (1.0 - poly * jnp.exp(-ax * ax))


def _gelu_exact(x):
    return 0.5 * x * (1.0 + _erf_poly(x * _INV_SQRT2))


# --------------------------------- kernel ----------------------------------
def ffn_kernel(x_ref, w1_ref, b1_ref, w2_ref, b2_ref, o_ref, acc_ref):
    # Grid: (row blocks i, hidden blocks f); f is the reduction axis.
    # x_ref: (tb, E), w1_ref: (E, tf), b1_ref: (1, tf),
    # w2_ref: (tf, E), b2_ref: (1, E), acc_ref: (tb, E) f32 scratch.
    f = pl.program_id(1)

    @pl.when(f == 0)
    def _():
        acc_ref[...] = jnp.zeros_like(acc_ref)

    h = jnp.dot(x_ref[...], w1_ref[...], preferred_element_type=jnp.float32)
    h = h + b1_ref[...].astype(jnp.float32)
    h = _gelu_exact(h)
    # Cast the (tb, tf) intermediate back to the weight dtype (bf16 in prod)
    # before the second MXU pass.
    acc_ref[...] += jnp.dot(h.astype(w2_ref.dtype), w2_ref[...],
                            preferred_element_type=jnp.float32)

    @pl.when(f == pl.num_programs(1) - 1)
    def _():
        o_ref[...] = (acc_ref[...] +
                      b2_ref[...].astype(jnp.float32)).astype(o_ref.dtype)


# ------------------------- one-time parameter setup --------------------------
def _pick_hidden_tile(embed_dim, hidden_dim, itemsize,
                      weight_budget_bytes=16 * 2**20):
    """Largest hidden tile whose W1+W2 slabs fit a per-buffer VMEM budget."""
    if 2 * embed_dim * hidden_dim * itemsize <= weight_budget_bytes:
        return hidden_dim                      # fully resident, single F step
    tf = weight_budget_bytes // (2 * embed_dim * itemsize)
    tf = max(256, (tf // 256) * 256)           # MXU-friendly multiple of 256
    return min(int(tf), hidden_dim)


def prepare_ffn_params(w1, b1, w2, b2, *, hidden_block=None):
    """Call ONCE at parameter-setup time (not per forward pass).

    Takes torch nn.Linear layouts: w1 (F, E), b1 (F,), w2 (E, F), b2 (E,).
    Transposes weights to (in, out) and zero-pads the hidden dim to a multiple
    of the chosen hidden tile so ragged F tiles never leak garbage into the
    accumulator (padded W2 rows are zero, so their contribution is exactly 0).
    """
    F_h, E = w1.shape
    tf = hidden_block or _pick_hidden_tile(E, F_h, jnp.dtype(w1.dtype).itemsize)
    Fp = ((F_h + tf - 1) // tf) * tf

    w1t = jnp.swapaxes(w1, 0, 1)               # (E, F)
    w2t = jnp.swapaxes(w2, 0, 1)               # (F, E)
    b1r = b1
    if Fp != F_h:
        w1t = jnp.pad(w1t, ((0, 0), (0, Fp - F_h)))
        w2t = jnp.pad(w2t, ((0, Fp - F_h), (0, 0)))
        b1r = jnp.pad(b1r, (0, Fp - F_h))

    return {"w1t": w1t, "b1": b1r[None, :], "w2t": w2t, "b2": b2[None, :],
            "hidden_block": tf}


def _vmem_limit_bytes():
    cap = 64 * 2**20                            # conservative (v7x per-TC)
    try:
        info_fn = getattr(pltpu, "get_tpu_info", None)
        if info_fn is not None:
            cap = info_fn().vmem_capacity_bytes
    except Exception:
        pass
    return int(min(100 * 2**20, int(cap * 0.9)))


# --------------------------------- wrapper ----------------------------------
def feed_forward(x, params, *, block_rows=256):
    """x: (..., E) array (any float dtype; bf16 stays bf16).  params from
    prepare_ffn_params().  Returns fc2(gelu(fc1(x))) with shape (..., E) and
    the same dtype as x."""
    w1t, b1 = params["w1t"], params["b1"]
    w2t, b2 = params["w2t"], params["b2"]
    tf = params["hidden_block"]

    E = x.shape[-1]
    Fp = w1t.shape[1]
    lead = x.shape[:-1]

    xm = x.reshape(-1, E)                       # no dtype cast, no padding
    M = xm.shape[0]

    # Row block: 256 fills the 256-wide MXU on v6e/v7x; shrink for tiny M.
    tb = min(block_rows, max(8, ((M + 7) // 8) * 8))
    n_m = pl.cdiv(M, tb)                        # ragged last block is masked
    n_f = Fp // tf

    out = pl.pallas_call(
        ffn_kernel,
        out_shape=jax.ShapeDtypeStruct((M, E), x.dtype),
        grid=(n_m, n_f),
        in_specs=[
            pl.BlockSpec((tb, E), lambda i, f: (i, 0)),    # x row block
            pl.BlockSpec((E, tf), lambda i, f: (0, f)),    # W1 tile
            pl.BlockSpec((1, tf), lambda i, f: (0, f)),    # b1 tile
            pl.BlockSpec((tf, E), lambda i, f: (f, 0)),    # W2 tile
            pl.BlockSpec((1, E), lambda i, f: (0, 0)),     # b2 (resident)
        ],
        out_specs=pl.BlockSpec((tb, E), lambda i, f: (i, 0)),
        scratch_shapes=[pltpu.VMEM((tb, E), jnp.float32)],  # f32 accumulator
        compiler_params=pltpu.CompilerParams(
            dimension_semantics=("parallel", "arbitrary"),
            vmem_limit_bytes=_vmem_limit_bytes()),
    )(xm, w1t, b1, w2t, b2)

    return out.reshape(*lead, E)


# ------------------------ pure-JAX reference (torch math) -------------------
def reference_forward(x, w1, b1, w2, b2):
    h = jax.nn.gelu(x @ w1.T + b1, approximate=False)
    return h @ w2.T + b2


# ----------------------------------- main ------------------------------------
if __name__ == "__main__":
    batch, seq, embed_dim, hidden_dim = 2, 8, 32, 64

    key = jax.random.PRNGKey(0)
    kx, k1, k2, k3, k4 = jax.random.split(key, 5)

    # torch nn.Linear layouts: weight (out_features, in_features), bias (out,)
    bound1 = 1.0 / math.sqrt(embed_dim)
    bound2 = 1.0 / math.sqrt(hidden_dim)
    w1 = jax.random.uniform(k1, (hidden_dim, embed_dim), jnp.float32, -bound1, bound1)
    b1 = jax.random.uniform(k2, (hidden_dim,), jnp.float32, -bound1, bound1)
    w2 = jax.random.uniform(k3, (embed_dim, hidden_dim), jnp.float32, -bound2, bound2)
    b2 = jax.random.uniform(k4, (embed_dim,), jnp.float32, -bound2, bound2)

    x = jax.random.normal(kx, (batch, seq, embed_dim), jnp.float32)

    # float32 path (matches the torch module's default dtype).
    params = prepare_ffn_params(w1, b1, w2, b2)        # one-time setup
    y_kernel = jax.block_until_ready(feed_forward(x, params))
    y_ref = jax.block_until_ready(reference_forward(x, w1, b1, w2, b2))

    assert y_kernel.shape == x.shape and y_kernel.dtype == x.dtype
    np.testing.assert_allclose(np.asarray(y_kernel), np.asarray(y_ref),
                               rtol=1e-2, atol=1e-2)

    # bf16 path: dtype-preserving wrapper (no hidden upcasts) — loose check.
    params_bf16 = prepare_ffn_params(
        w1.astype(jnp.bfloat16), b1.astype(jnp.bfloat16),
        w2.astype(jnp.bfloat16), b2.astype(jnp.bfloat16))
    y_bf16 = jax.block_until_ready(feed_forward(x.astype(jnp.bfloat16), params_bf16))
    assert y_bf16.shape == x.shape and y_bf16.dtype == jnp.bfloat16
    np.testing.assert_allclose(np.asarray(y_bf16, dtype=np.float32),
                               np.asarray(y_ref), rtol=1e-1, atol=1e-1)

    print("KERNEL_OK")
</pallas_src>

<mosaic_0001>
module attributes {stable_mosaic.version = 11 : i64} {
  func.func @ffn_kernel(%arg0: i32, %arg1: i32, %arg2: memref<16x32xf32, #tpu.memory_space<vmem>>, %arg3: memref<32x64xf32, #tpu.memory_space<vmem>>, %arg4: memref<1x64xf32, #tpu.memory_space<vmem>>, %arg5: memref<64x32xf32, #tpu.memory_space<vmem>>, %arg6: memref<1x32xf32, #tpu.memory_space<vmem>>, %arg7: memref<16x32xf32, #tpu.memory_space<vmem>>, %arg8: memref<16x32xf32, #tpu.memory_space<vmem>>) attributes {dimension_semantics = [#tpu.dimension_semantics<parallel>, #tpu.dimension_semantics<arbitrary>], iteration_bounds = array<i64: 1, 1>, scalar_prefetch = 0 : i64, scratch_operands = 1 : i64, tpu.core_type = #tpu.core_type<tc>, window_params = [{transform_indices = @transform_0, window_bounds = array<i64: 16, 32>}, {transform_indices = @transform_1, window_bounds = array<i64: 32, 64>}, {transform_indices = @transform_2, window_bounds = array<i64: 1, 64>}, {transform_indices = @transform_3, window_bounds = array<i64: 64, 32>}, {pipeline_mode = #tpu.pipeline_mode<synchronous>, transform_indices = @transform_4, window_bounds = array<i64: 1, 32>}, {transform_indices = @transform_5, window_bounds = array<i64: 16, 32>}]} {
    %c0_i32 = arith.constant 0 : i32
    %0 = arith.cmpi eq, %arg1, %c0_i32 : i32
    %1 = arith.extui %0 : i1 to i32
    %c0_i32_0 = arith.constant 0 : i32
    %2 = arith.cmpi ne, %1, %c0_i32_0 : i32
    scf.if %2 {
      %cst_30 = arith.constant 0.000000e+00 : f32
      %57 = vector.broadcast %cst_30 : f32 to vector<16x32xf32>
      %c0_31 = arith.constant 0 : index
      %c0_32 = arith.constant 0 : index
      %58 = vector.load %arg8[%c0_31, %c0_32] : memref<16x32xf32, #tpu.memory_space<vmem>>, vector<16x32xf32>
      tpu.vector_store %arg8[%c0_31, %c0_32], %57 {strides = array<i32>} : memref<16x32xf32, #tpu.memory_space<vmem>>, vector<16x32xf32>,
    } else {
    }
    %c0 = arith.constant 0 : index
    %c0_1 = arith.constant 0 : index
    %3 = vector.load %arg2[%c0, %c0_1] : memref<16x32xf32, #tpu.memory_space<vmem>>, vector<16x32xf32>
    %c0_2 = arith.constant 0 : index
    %c0_3 = arith.constant 0 : index
    %4 = vector.load %arg3[%c0_2, %c0_3] : memref<32x64xf32, #tpu.memory_space<vmem>>, vector<32x64xf32>
    %cst = arith.constant dense<0.000000e+00> : vector<16x64xf32>
    %5 = tpu.matmul %3, %4, %cst {dimension_numbers = #tpu.dot_dimension_numbers<[1], [0], [0], [1], [0, 0, 1, 1], [], []>} : vector<16x32xf32>, vector<32x64xf32>, vector<16x64xf32> -> vector<16x64xf32>
    %c0_4 = arith.constant 0 : index
    %c0_5 = arith.constant 0 : index
    %6 = vector.load %arg4[%c0_4, %c0_5] : memref<1x64xf32, #tpu.memory_space<vmem>>, vector<1x64xf32>
    %7 = vector.broadcast %6 : vector<1x64xf32> to vector<16x64xf32>
    %8 = arith.addf %5, %7 : vector<16x64xf32>
    %cst_6 = arith.constant 5.000000e-01 : f32
    %9 = vector.broadcast %cst_6 : f32 to vector<16x64xf32>
    %10 = arith.mulf %9, %8 : vector<16x64xf32>
    %cst_7 = arith.constant 0.707106769 : f32
    %11 = vector.broadcast %cst_7 : f32 to vector<16x64xf32>
    %12 = arith.mulf %8, %11 : vector<16x64xf32>
    %cst_8 = arith.constant 0.000000e+00 : f32
    %13 = vector.broadcast %cst_8 : f32 to vector<16x64xf32>
    %14 = arith.cmpf oge, %12, %13 : vector<16x64xf32>
    %cst_9 = arith.constant 1.000000e+00 : f32
    %cst_10 = arith.constant -1.000000e+00 : f32
    %15 = vector.broadcast %cst_9 : f32 to vector<16x64xf32>
    %16 = vector.broadcast %cst_10 : f32 to vector<16x64xf32>
    %17 = arith.select %14, %15, %16 : vector<16x64xi1>, vector<16x64xf32>
    %18 = math.absf %12 : vector<16x64xf32>
    %cst_11 = arith.constant 0.327591091 : f32
    %19 = vector.broadcast %cst_11 : f32 to vector<16x64xf32>
    %20 = arith.mulf %19, %18 : vector<16x64xf32>
    %cst_12 = arith.constant 1.000000e+00 : f32
    %21 = vector.broadcast %cst_12 : f32 to vector<16x64xf32>
    %22 = arith.addf %21, %20 : vector<16x64xf32>
    %23 = tpu.reciprocal %22 {approx = true} : vector<16x64xf32> -> vector<16x64xf32>
    %cst_13 = arith.constant 1.06140542 : f32
    %24 = vector.broadcast %cst_13 : f32 to vector<16x64xf32>
    %25 = arith.mulf %24, %23 : vector<16x64xf32>
    %cst_14 = arith.constant -1.45315206 : f32
    %26 = vector.broadcast %cst_14 : f32 to vector<16x64xf32>
    %27 = arith.addf %25, %26 : vector<16x64xf32>
    %28 = arith.mulf %27, %23 : vector<16x64xf32>
    %cst_15 = arith.constant 1.42141378 : f32
    %29 = vector.broadcast %cst_15 : f32 to vector<16x64xf32>
    %30 = arith.addf %28, %29 : vector<16x64xf32>
    %31 = arith.mulf %30, %23 : vector<16x64xf32>
    %cst_16 = arith.constant -0.284496725 : f32
    %32 = vector.broadcast %cst_16 : f32 to vector<16x64xf32>
    %33 = arith.addf %31, %32 : vector<16x64xf32>
    %34 = arith.mulf %33, %23 : vector<16x64xf32>
    %cst_17 = arith.constant 0.254829586 : f32
    %35 = vector.broadcast %cst_17 : f32 to vector<16x64xf32>
    %36 = arith.addf %34, %35 : vector<16x64xf32>
    %37 = arith.mulf %36, %23 : vector<16x64xf32>
    %cst_18 = arith.constant 0.000000e+00 : f32
    %38 = vector.broadcast %cst_18 : f32 to vector<16x64xf32>
    %39 = arith.subf %38, %18 : vector<16x64xf32>
    %40 = arith.mulf %39, %18 : vector<16x64xf32>
    %41 = math.exp %40 : vector<16x64xf32>
    %42 = arith.mulf %37, %41 : vector<16x64xf32>
    %cst_19 = arith.constant 1.000000e+00 : f32
    %43 = vector.broadcast %cst_19 : f32 to vector<16x64xf32>
    %44 = arith.subf %43, %42 : vector<16x64xf32>
    %45 = arith.mulf %17, %44 : vector<16x64xf32>
    %cst_20 = arith.constant 1.000000e+00 : f32
    %46 = vector.broadcast %cst_20 : f32 to vector<16x64xf32>
    %47 = arith.addf %46, %45 : vector<16x64xf32>
    %48 = arith.mulf %10, %47 : vector<16x64xf32>
    %c0_21 = arith.constant 0 : index
    %c0_22 = arith.constant 0 : index
    %49 = vector.load %arg8[%c0_21, %c0_22] : memref<16x32xf32, #tpu.memory_space<vmem>>, vector<16x32xf32>
    %c0_23 = arith.constant 0 : index
    %c0_24 = arith.constant 0 : index
    %50 = vector.load %arg5[%c0_23, %c0_24] : memref<64x32xf32, #tpu.memory_space<vmem>>, vector<64x32xf32>
    %cst_25 = arith.constant dense<0.000000e+00> : vector<16x32xf32>
    %51 = tpu.matmul %48, %50, %cst_25 {dimension_numbers = #tpu.dot_dimension_numbers<[1], [0], [0], [1], [0, 0, 1, 1], [], []>} : vector<16x64xf32>, vector<64x32xf32>, vector<16x32xf32> -> vector<16x32xf32>
    %52 = arith.addf %49, %51 : vector<16x32xf32>
    %c0_26 = arith.constant 0 : index
    %c0_27 = arith.constant 0 : index
    %53 = vector.load %arg8[%c0_26, %c0_27] : memref<16x32xf32, #tpu.memory_space<vmem>>, vector<16x32xf32>
    tpu.vector_store %arg8[%c0_26, %c0_27], %52 {strides = array<i32>} : memref<16x32xf32, #tpu.memory_space<vmem>>, vector<16x32xf32>,
    %c0_i32_28 = arith.constant 0 : i32
    %54 = arith.cmpi eq, %arg1, %c0_i32_28 : i32
    %55 = arith.extui %54 : i1 to i32
    %c0_i32_29 = arith.constant 0 : i32
    %56 = arith.cmpi ne, %55, %c0_i32_29 : i32
    scf.if %56 {
      %c0_30 = arith.constant 0 : index
      %c0_31 = arith.constant 0 : index
      %57 = vector.load %arg8[%c0_30, %c0_31] : memref<16x32xf32, #tpu.memory_space<vmem>>, vector<16x32xf32>
      %c0_32 = arith.constant 0 : index
      %c0_33 = arith.constant 0 : index
      %58 = vector.load %arg6[%c0_32, %c0_33] : memref<1x32xf32, #tpu.memory_space<vmem>>, vector<1x32xf32>
      %59 = vector.broadcast %58 : vector<1x32xf32> to vector<16x32xf32>
      %60 = arith.addf %57, %59 : vector<16x32xf32>
      %c0_34 = arith.constant 0 : index
      %c0_35 = arith.constant 0 : index
      %61 = vector.load %arg7[%c0_34, %c0_35] : memref<16x32xf32, #tpu.memory_space<vmem>>, vector<16x32xf32>
      tpu.vector_store %arg7[%c0_34, %c0_35], %60 {strides = array<i32>} : memref<16x32xf32, #tpu.memory_space<vmem>>, vector<16x32xf32>,
    } else {
    }
    return
  }
  func.func @transform_0(%arg0: i32, %arg1: i32) -> (i32, i32) {
    %c0_i32 = arith.constant 0 : i32
    %c0_i32_0 = arith.constant 0 : i32
    return %arg0, %c0_i32 : i32, i32
  }
  func.func @transform_1(%arg0: i32, %arg1: i32) -> (i32, i32) {
    %c0_i32 = arith.constant 0 : i32
    %c0_i32_0 = arith.constant 0 : i32
    return %c0_i32, %arg1 : i32, i32
  }
  func.func @transform_2(%arg0: i32, %arg1: i32) -> (i32, i32) {
    %c0_i32 = arith.constant 0 : i32
    %c0_i32_0 = arith.constant 0 : i32
    return %c0_i32, %arg1 : i32, i32
  }
  func.func @transform_3(%arg0: i32, %arg1: i32) -> (i32, i32) {
    %c0_i32 = arith.constant 0 : i32
    %c0_i32_0 = arith.constant 0 : i32
    return %arg1, %c0_i32 : i32, i32
  }
  func.func @transform_4(%arg0: i32, %arg1: i32) -> (i32, i32) {
    %c0_i32 = arith.constant 0 : i32
    %c0_i32_0 = arith.constant 0 : i32
    %c0_i32_1 = arith.constant 0 : i32
    return %c0_i32, %c0_i32_0 : i32, i32
  }
  func.func @transform_5(%arg0: i32, %arg1: i32) -> (i32, i32) {
    %c0_i32 = arith.constant 0 : i32
    %c0_i32_0 = arith.constant 0 : i32
    return %arg0, %c0_i32 : i32, i32
  }
}

</mosaic_0001>

<llo_original>
// kernel: tpu_custom_call.1
$region0: #{tpu_custom_call.1}
  #allocation0 [shape = 'u32[]', space=smem, size = 0x4, offset = 0x4, fixed_abs, tag = 'smem constant byte address 0x4 - core index']
  #allocation1 [shape = 'u32[144,128]{1,0:T(1,128)}', space=vmem, size = 0x12000, scoped, tag = 'internal scratch']
  #allocation2 [shape = 'f32[16,32]{1,0:T(8,128)}', space=vmem, size = 0x2000, scoped, tag = 'scratch operand']
  %s0 = inlined_call_operand.vmem [shape: f32[16,32], index: 0, kind: input, shape index: {}]
  %s1 = inlined_call_operand.vmem [shape: f32[32,64], index: 1, kind: input, shape index: {}]
  %s2 = inlined_call_operand.vmem [shape: f32[1,64], index: 2, kind: input, shape index: {}]
  %s3 = inlined_call_operand.vmem [shape: f32[64,32], index: 3, kind: input, shape index: {}]
  %s4 = inlined_call_operand.vmem [shape: f32[1,32], index: 4, kind: input, shape index: {}]
  %s5 = inlined_call_operand.hbm [shape: f32[16,32], index: 5, kind: output, shape index: {}]
  %s6 = sld [smem:[#allocation0]]
  $region38: #{tpu_custom_call.1} parent=0
    _
  %s8 = ssub.s32 1, %s6
  %s9 = scalar_select 0, %s8, %s6
  $region1: #{tpu_custom_call.1} parent=0
    #allocation3 [shape = 'u8[8192]{0}', space=vmem, size = 0x2000, scoped, tag = 'output window, operand 0, single buffered']
    #allocation4 [shape = 's32[1]{0}', space=sflag, size = 0x4, scoped, tag = 'scoped memory for tpu_custom_call.1']
    %10 = vsyncpa [#allocation4], 0
    // Predicated region
    $region2: #{tpu_custom_call.1} parent=1 // pred_check
      _
    $region3: #{tpu_custom_call.1} parent=1 // pred_check_branch
      %12 = sbr.rel (0) target = $region5
    $region4: #{tpu_custom_call.1} parent=1 // pred_region
      _
    $region5: #{tpu_custom_call.1} parent=1 // pred_fallthru
      _
    // Predicated region
    $region6: #{tpu_custom_call.1} parent=1 // pred_check
      _
    $region7: #{tpu_custom_call.1} parent=1 // pred_check_branch
      %14 = sbr.rel (0) target = $region9
    $region8: #{tpu_custom_call.1} parent=1 // pred_region
      _
    $region9: #{tpu_custom_call.1} parent=1 // pred_fallthru
      _
    // Predicated region
    $region10: #{tpu_custom_call.1} parent=1 // pred_check
      _
    $region11: #{tpu_custom_call.1} parent=1 // pred_check_branch
      %16 = sbr.rel (0) target = $region13
    $region12: #{tpu_custom_call.1} parent=1 // pred_region
      _
    $region13: #{tpu_custom_call.1} parent=1 // pred_fallthru
      _
    // Predicated region
    $region14: #{tpu_custom_call.1} parent=1 // pred_check
      _
    $region15: #{tpu_custom_call.1} parent=1 // pred_check_branch
      %18 = sbr.rel (0) target = $region17
    $region16: #{tpu_custom_call.1} parent=1 // pred_region
      _
    $region17: #{tpu_custom_call.1} parent=1 // pred_fallthru
      _
    // Predicated region
    $region18: #{tpu_custom_call.1} parent=1 // pred_check
      _
    $region19: #{tpu_custom_call.1} parent=1 // pred_check_branch
      %20 = sbr.rel (0) target = $region21
    $region20: #{tpu_custom_call.1} parent=1 // pred_region
      _
    $region21: #{tpu_custom_call.1} parent=1 // pred_fallthru
      _
    %p21 = scmp.eq.s32.totalorder 0, 0
    // Predicated region
    $region22: #{tpu_custom_call.1} parent=1 // pred_check
      %p22 = pneg %p21
    $region23: #{tpu_custom_call.1} parent=1 // pred_check_branch
      %24 = sbr.rel (%p22) target = $region25
    $region24: #{tpu_custom_call.1} parent=1 // pred_region
      %vm25 = vcmask 261120
      %26 = vst.msk [vmem:[#allocation2] sm:$0xff] %vm25, 0.0
      %27 = vst.msk [vmem:[#allocation2 + $0x8] sm:$0xff] %vm25, 0.0
    $region25: #{tpu_custom_call.1} parent=1 // pred_fallthru
      _
    %v28 = vld [vmem:[%s0] sm:$0xff]
    %v29 = vld [vmem:[%s0 + $0x8] sm:$0xff]
    %v30 = vld [vmem:[%s1] sm:$0xff]
    %v31 = vld [vmem:[%s1 + $0x8] sm:$0xff]
    %v32 = vld [vmem:[%s1 + $0x10] sm:$0xff]
    %v33 = vld [vmem:[%s1 + $0x18] sm:$0xff]
    %v34 = vld [vmem:[%s2] sm:$0x1]
    %v36 = vlaneseq
    %v37 = vshrl.u32 %v36, 7
    %v38 = vsub.s32 0, %v37
    %v39 = vrot.slane %v34, %v38
    %vm41 = vcmask 261120
    %v43 = vsel %vm41, %v28, 0
    %v46 = vsel %vm41, %v29, 0
    %48 = vmatprep.subr.mxu0 0.0
    %49 = vmatpush1.msra.mxu0 0.0
    %50 = vmatprep.subr.mxu0 0.0
    %51 = vmatpush1.msra.mxu0 0.0
    %52 = vmatprep.subr.mxu0 0.0
    %53 = vmatpush1.msra.mxu0 0.0
    %54 = vmatprep.subr.mxu0 0.0
    %55 = vmatpush1.msra.mxu0 0.0
    %56 = vmatprep.subr.mxu0 0.0
    %57 = vmatpush1.msra.mxu0 0.0
    %58 = vmatprep.subr.mxu0 0.0
    %59 = vmatpush1.msra.mxu0 0.0
    %60 = vmatprep.subr.mxu0 0.0
    %61 = vmatpush1.msra.mxu0 0.0
    %62 = vmatprep.subr.mxu0 0.0
    %63 = vmatpush1.msra.mxu0 0.0
    %64 = vmatprep.subr.mxu0 0.0
    %65 = vmatpush1.msra.mxu0 0.0
    %66 = vmatprep.subr.mxu0 0.0
    %67 = vmatpush1.msra.mxu0 0.0
    %68 = vmatprep.subr.mxu0 0.0
    %69 = vmatpush1.msra.mxu0 0.0
    %70 = vmatprep.subr.mxu0 0.0
    %71 = vmatpush1.msra.mxu0 0.0
    %72 = vmatprep.subr.mxu0 0.0
    %73 = vmatpush1.msra.mxu0 %v33
    %74 = vmatprep.subr.mxu0 0.0
    %75 = vmatpush1.msra.mxu0 %v32
    %76 = vmatprep.subr.mxu0 0.0
    %77 = vmatpush1.msra.mxu0 %v31
    %78 = vmatprep.subr.mxu0 0.0
    %79 = vmatpush1.msra.mxu0 %v30
    %80 = vmatprep.subr.mxu0 0.0
    %81 = vmatpush2.msra.mxu0 0.0
    %82 = vmatprep.subr.mxu0 0.0
    %83 = vmatpush2.msra.mxu0 0.0
    %84 = vmatprep.subr.mxu0 0.0
    %85 = vmatpush2.msra.mxu0 0.0
    %86 = vmatprep.subr.mxu0 0.0
    %87 = vmatpush2.msra.mxu0 0.0
    %88 = vmatprep.subr.mxu0 0.0
    %89 = vmatpush2.msra.mxu0 0.0
    %90 = vmatprep.subr.mxu0 0.0
    %91 = vmatpush2.msra.mxu0 0.0
    %92 = vmatprep.subr.mxu0 0.0
    %93 = vmatpush2.msra.mxu0 0.0
    %94 = vmatprep.subr.mxu0 0.0
    %95 = vmatpush2.msra.mxu0 0.0
    %96 = vmatprep.subr.mxu0 0.0
    %97 = vmatpush2.msra.mxu0 0.0
    %98 = vmatprep.subr.mxu0 0.0
    %99 = vmatpush2.msra.mxu0 0.0
    %100 = vmatprep.subr.mxu0 0.0
    %101 = vmatpush2.msra.mxu0 0.0
    %102 = vmatprep.subr.mxu0 0.0
    %103 = vmatpush2.msra.mxu0 0.0
    %104 = vmatprep.subr.mxu0 0.0
    %105 = vmatpush2.msra.mxu0 0.0
    %106 = vmatprep.subr.mxu0 0.0
    %107 = vmatpush2.msra.mxu0 0.0
    %108 = vmatprep.subr.mxu0 0.0
    %109 = vmatpush2.msra.mxu0 0.0
    %110 = vmatprep.subr.mxu0 0.0
    %111 = vmatpush2.msra.mxu0 0.0
    %112 = vmatprep.mubr.f32.mxu0 0.0
    %113 = vmatmul.mubr.f32.gmra.mxu0 %v43
    %v114 = vpop.f32.mrf.mxu0
    %v115 = vadd.f32 %v39, %v114
    %v116 = vpop.f32.mrf.mxu0
    %117 = vmatprep.mubr.f32.mxu0 0.0
    %118 = vmatmul.mubr.f32.gmra.mxu0 %v46
    %v119 = vpop.f32.mrf.mxu0
    %v120 = vadd.f32 %v39, %v119
    %v121 = vpop.f32.mrf.mxu0
    %122 = vdwg.mxu0
    %v123 = vmul.f32 %v115, 0.5
    %v124 = vmul.f32 %v120, 0.5
    %v125 = vmul.f32 %v115, 0.70710677
    %v126 = vmul.f32 %v120, 0.70710677
    %vm127 = vcmp.ge.f32.partialorder %v125, 0.0
    %vm128 = vcmp.ge.f32.partialorder %v126, 0.0
    %v129 = vsel %vm127, 1.0, -1.0
    %v130 = vsel %vm128, 1.0, -1.0
    %v131 = vand.u32 2147483647, %v125
    %v132 = vand.u32 2147483647, %v126
    %v133 = vmul.f32 %v131, 0.3275911
    %v134 = vmul.f32 %v132, 0.3275911
    %v135 = vadd.f32 %v133, 1.0
    %v136 = vadd.f32 %v134, 1.0
    %v137 = vrcp.pop %v135
    %v138 = vrcp.pop %v136
    %v139 = vmul.f32 %v137, 1.0614054
    %v140 = vmul.f32 %v138, 1.0614054
    %v141 = vadd.f32 %v139, -1.4531521
    %v142 = vadd.f32 %v140, -1.4531521
    %v143 = vmul.f32 %v141, %v137
    %v144 = vmul.f32 %v142, %v138
    %v145 = vadd.f32 %v143, 1.4214138
    %v146 = vadd.f32 %v144, 1.4214138
    %v147 = vmul.f32 %v145, %v137
    %v148 = vmul.f32 %v146, %v138
    %v149 = vadd.f32 %v147, -0.28449672
    %v150 = vadd.f32 %v148, -0.28449672
    %v151 = vmul.f32 %v149, %v137
    %v152 = vmul.f32 %v150, %v138
    %v153 = vadd.f32 %v151, 0.2548296
    %v154 = vadd.f32 %v152, 0.2548296
    %v155 = vmul.f32 %v153, %v137
    %v156 = vmul.f32 %v154, %v138
    %v157 = vsub.f32 0.0, %v131
    %v158 = vsub.f32 0.0, %v132
    %v159 = vmul.f32 %v157, %v131
    %v160 = vmul.f32 %v158, %v132
    %v161 = vmul.f32 %v159, 1.442695
    %v162 = vpow.pop %v161
    %v163 = vmul.f32 %v160, 1.442695
    %v164 = vpow.pop %v163
    %v165 = vmul.f32 %v155, %v162
    %v166 = vmul.f32 %v156, %v164
    %v167 = vsub.f32 1.0, %v165
    %v168 = vsub.f32 1.0, %v166
    %v169 = vmul.f32 %v129, %v167
    %v170 = vmul.f32 %v130, %v168
    %v171 = vadd.f32 %v169, 1.0
    %v172 = vadd.f32 %v170, 1.0
    %v173 = vmul.f32 %v123, %v171
    %v174 = vmul.f32 %v124, %v172
    %v175 = vld [vmem:[#allocation2] sm:$0xff]
    %v176 = vld [vmem:[#allocation2 + $0x8] sm:$0xff]
    %v177 = vld [vmem:[%s3] sm:$0xff]
    %v178 = vld [vmem:[%s3 + $0x8] sm:$0xff]
    %v179 = vld [vmem:[%s3 + $0x10] sm:$0xff]
    %v180 = vld [vmem:[%s3 + $0x18] sm:$0xff]
    %v181 = vld [vmem:[%s3 + $0x20] sm:$0xff]
    %v182 = vld [vmem:[%s3 + $0x28] sm:$0xff]
    %v183 = vld [vmem:[%s3 + $0x30] sm:$0xff]
    %v184 = vld [vmem:[%s3 + $0x38] sm:$0xff]
    %vm185 = vcmask 523264
    %v187 = vsel %vm185, %v173, 0
    %v190 = vsel %vm185, %v174, 0
    %192 = vmatprep.subr.mxu0 0.0
    %193 = vmatpush1.msra.mxu0 0.0
    %194 = vmatprep.subr.mxu0 0.0
    %195 = vmatpush1.msra.mxu0 0.0
    %196 = vmatprep.subr.mxu0 0.0
    %197 = vmatpush1.msra.mxu0 0.0
    %198 = vmatprep.subr.mxu0 0.0
    %199 = vmatpush1.msra.mxu0 0.0
    %200 = vmatprep.subr.mxu0 0.0
    %201 = vmatpush1.msra.mxu0 0.0
    %202 = vmatprep.subr.mxu0 0.0
    %203 = vmatpush1.msra.mxu0 0.0
    %204 = vmatprep.subr.mxu0 0.0
    %205 = vmatpush1.msra.mxu0 0.0
    %206 = vmatprep.subr.mxu0 0.0
    %207 = vmatpush1.msra.mxu0 0.0
    %208 = vmatprep.subr.mxu0 0.0
    %209 = vmatpush1.msra.mxu0 %v184
    %210 = vmatprep.subr.mxu0 0.0
    %211 = vmatpush1.msra.mxu0 %v183
    %212 = vmatprep.subr.mxu0 0.0
    %213 = vmatpush1.msra.mxu0 %v182
    %214 = vmatprep.subr.mxu0 0.0
    %215 = vmatpush1.msra.mxu0 %v181
    %216 = vmatprep.subr.mxu0 0.0
    %217 = vmatpush1.msra.mxu0 %v180
    %218 = vmatprep.subr.mxu0 0.0
    %219 = vmatpush1.msra.mxu0 %v179
    %220 = vmatprep.subr.mxu0 0.0
    %221 = vmatpush1.msra.mxu0 %v178
    %222 = vmatprep.subr.mxu0 0.0
    %223 = vmatpush1.msra.mxu0 %v177
    %224 = vmatprep.subr.mxu0 0.0
    %225 = vmatpush2.msra.mxu0 0.0
    %226 = vmatprep.subr.mxu0 0.0
    %227 = vmatpush2.msra.mxu0 0.0
    %228 = vmatprep.subr.mxu0 0.0
    %229 = vmatpush2.msra.mxu0 0.0
    %230 = vmatprep.subr.mxu0 0.0
    %231 = vmatpush2.msra.mxu0 0.0
    %232 = vmatprep.subr.mxu0 0.0
    %233 = vmatpush2.msra.mxu0 0.0
    %234 = vmatprep.subr.mxu0 0.0
    %235 = vmatpush2.msra.mxu0 0.0
    %236 = vmatprep.subr.mxu0 0.0
    %237 = vmatpush2.msra.mxu0 0.0
    %238 = vmatprep.subr.mxu0 0.0
    %239 = vmatpush2.msra.mxu0 0.0
    %240 = vmatprep.subr.mxu0 0.0
    %241 = vmatpush2.msra.mxu0 0.0
    %242 = vmatprep.subr.mxu0 0.0
    %243 = vmatpush2.msra.mxu0 0.0
    %244 = vmatprep.subr.mxu0 0.0
    %245 = vmatpush2.msra.mxu0 0.0
    %246 = vmatprep.subr.mxu0 0.0
    %247 = vmatpush2.msra.mxu0 0.0
    %248 = vmatprep.subr.mxu0 0.0
    %249 = vmatpush2.msra.mxu0 0.0
    %250 = vmatprep.subr.mxu0 0.0
    %251 = vmatpush2.msra.mxu0 0.0
    %252 = vmatprep.subr.mxu0 0.0
    %253 = vmatpush2.msra.mxu0 0.0
    %254 = vmatprep.subr.mxu0 0.0
    %255 = vmatpush2.msra.mxu0 0.0
    %256 = vmatprep.mubr.f32.mxu0 0.0
    %257 = vmatmul.mubr.f32.gmra.mxu0 %v187
    %v258 = vpop.f32.mrf.mxu0
    %v259 = vadd.f32 0.0, %v258
    %v260 = vpop.f32.mrf.mxu0
    %261 = vmatprep.mubr.f32.mxu0 0.0
    %262 = vmatmul.mubr.f32.gmra.mxu0 %v190
    %v263 = vpop.f32.mrf.mxu0
    %v264 = vadd.f32 0.0, %v263
    %v265 = vpop.f32.mrf.mxu0
    %266 = vdwg.mxu0
    %v267 = vadd.f32 %v175, %v259
    %v268 = vadd.f32 %v176, %v264
    %269 = vst.msk [vmem:[#allocation2] sm:$0xff] %vm41, %v267
    %270 = vst.msk [vmem:[#allocation2 + $0x8] sm:$0xff] %vm41, %v268
    // Predicated region
    $region26: #{tpu_custom_call.1} parent=1 // pred_check
      %p271 = pneg %p21
    $region27: #{tpu_custom_call.1} parent=1 // pred_check_branch
      %273 = sbr.rel (%p271) target = $region29
    $region28: #{tpu_custom_call.1} parent=1 // pred_region
      %v274 = vld [vmem:[#allocation2] sm:$0xff]
      %v275 = vld [vmem:[#allocation2 + $0x8] sm:$0xff]
      %v276 = vld [vmem:[%s4] sm:$0x1]
      %v278 = vlaneseq
      %v279 = vshrl.u32 %v278, 7
      %v280 = vsub.s32 0, %v279
      %v281 = vrot.slane %v276, %v280
      %v283 = vadd.f32 %v274, %v281
      %v284 = vadd.f32 %v275, %v281
      %285 = vst.msk [vmem:[#allocation3] sm:$0xff] %vm41, %v283
      %286 = vst.msk [vmem:[#allocation3 + $0x8] sm:$0xff] %vm41, %v284
    $region29: #{tpu_custom_call.1} parent=1 // pred_fallthru
      _
    // Predicated region
    $region30: #{tpu_custom_call.1} parent=1 // pred_check
      _
    $region31: #{tpu_custom_call.1} parent=1 // pred_check_branch
      %288 = sbr.rel (0) target = $region33
    $region32: #{tpu_custom_call.1} parent=1 // pred_region
      %s290 = ssub.s32 256, 256
      %291 = vsyncadd [#allocation4], %s290
      %s292 = sshll.u32 [#allocation3], 4
      %s293 = int_to_ptr.vmem [resolvable:$true] %s292
      %298 = dma.vmem_to_hbm [thread:$0]  %s293, 256, %s5, [#allocation4], 128, 128, 8
    $region33: #{tpu_custom_call.1} parent=1 // pred_fallthru
      _
    // Predicated region
    $region34: #{tpu_custom_call.1} parent=1 // pred_check
      _
    $region35: #{tpu_custom_call.1} parent=1 // pred_check_branch
      %300 = sbr.rel (0) target = $region37
    $region36: #{tpu_custom_call.1} parent=1 // pred_region
      %301 = dma.done [#allocation4], 256
    $region37: #{tpu_custom_call.1} parent=1 // pred_fallthru
      _
    %302 = vsyncpa [#allocation4], 1

</llo_original>
